<compile_context>
chip_gen: v6e
topology: v6e:2x2x1
jax: 0.10.0
libtpu: 0.0.40
codegen_flags: <defaults>
</compile_context>

<pallas_src>
import jax
import jax.numpy as jnp
from jax.experimental import pallas as pl
from jax.experimental.pallas import tpu as pltpu

_LANES = 128


def _swish_kernel(x_ref, o_ref):
    # Compute in f32 regardless of storage dtype (free under the HBM roofline,
    # better numerics than bf16 exp/divide). approx reciprocal rides the EUP
    # slot; one Newton step makes 1/denom ~f32-exact at zero wall-clock cost.
    xf = x_ref[...].astype(jnp.float32)
    denom = 1.0 + jnp.exp(-xf)
    y = pl.reciprocal(denom, approx=True)
    y = y * (2.0 - denom * y)                 # Newton refinement
    o_ref[...] = (xf * y).astype(o_ref.dtype)


def _vmem_capacity_bytes():
    try:
        return int(pltpu.get_tpu_info().vmem_capacity_bytes)
    except Exception:
        return 64 * 1024 * 1024  # conservative fallback (v7x per-TC VMEM)


def _cdiv(a, b):
    return -(-a // b)


def _round_up(a, m):
    return _cdiv(a, m) * m


def _swish_2d(x2d, donate_input=False):
    """Run the SWISH kernel over a lane-dense (n_rows, 128) slab."""
    n_rows, lanes = x2d.shape
    assert lanes == _LANES
    itemsize = jnp.dtype(x2d.dtype).itemsize
    # Sublane packing: 8 rows (32-bit), 16 (bf16/fp16), 32 (int8/fp8).
    row_pack = 8 * max(1, 4 // itemsize)

    vmem_bytes = _vmem_capacity_bytes()
    # ~16 MiB blocks on 128 MiB-VMEM chips (v5e/v6e); the vmem//8 cap keeps
    # v7x (64 MiB per TC) at ~8 MiB so 4x double-buffered blocks fit easily.
    target_block_bytes = min(16 * 1024 * 1024, vmem_bytes // 8)
    rows_per_block = max(
        row_pack,
        (target_block_bytes // (_LANES * itemsize)) // row_pack * row_pack,
    )

    if n_rows <= 2 * row_pack:
        tile_rows = n_rows  # single full-extent block (always legal)
    else:
        # At least two blocks so dimension_semantics=("parallel",) actually
        # shards across both v7x TensorCores; cap at the VMEM block budget.
        tile_rows = min(rows_per_block, _round_up(_cdiv(n_rows, 2), row_pack))
        nblocks = _cdiv(n_rows, tile_rows)
        if nblocks > 1 and nblocks % 2 == 1:
            # Prefer an even block count -> balanced 2-TC split (no 2-vs-1 tail).
            tile_rows = max(row_pack,
                            _round_up(_cdiv(n_rows, nblocks + 1), row_pack))
    grid = (_cdiv(n_rows, tile_rows),)

    block_bytes = tile_rows * _LANES * itemsize
    # Pallas double-buffers input + output (~4x block bytes resident). Explicit
    # vmem_limit is required for big blocks on v5e (16 MiB default scoped VMEM)
    # and is clamped to <= 75% of this generation's VMEM (<= ~48 MiB on v7x).
    vmem_limit = int(min(int(0.75 * vmem_bytes),
                         max(32 * 1024 * 1024, 4 * block_bytes + (2 << 20))))

    return pl.pallas_call(
        _swish_kernel,
        out_shape=jax.ShapeDtypeStruct((n_rows, _LANES), x2d.dtype),
        grid_spec=pltpu.PrefetchScalarGridSpec(
            num_scalar_prefetch=0,
            grid=grid,
            in_specs=[pl.BlockSpec((tile_rows, _LANES), lambda i: (i, 0))],
            out_specs=pl.BlockSpec((tile_rows, _LANES), lambda i: (i, 0)),
        ),
        compiler_params=pltpu.CompilerParams(
            dimension_semantics=("parallel",),
            vmem_limit_bytes=vmem_limit,
        ),
        input_output_aliases=({0: 0} if donate_input else {}),
    )(x2d)


def swish(x, *, donate_input=False):
    """SWISH activation: x * sigmoid(x). Matches torch's x * torch.sigmoid(x)."""
    orig_shape = x.shape
    n = x.size
    if n == 0:
        return x
    x_flat = x.reshape(-1)
    rem = n % _LANES

    if rem == 0:
        # Common path: pure reshape (no copy) into a lane-dense slab.
        out = _swish_2d(x_flat.reshape(n // _LANES, _LANES), donate_input)
        return out.reshape(orig_shape)

    n_main = n - rem
    if n_main == 0:
        # Tiny input (< 128 elements): pad to one lane row (negligible cost).
        xp = jnp.pad(x_flat, (0, _LANES - rem))
        out = _swish_2d(xp.reshape(1, _LANES))
        return out.reshape(-1)[:n].reshape(orig_shape)

    # Ragged path: kernel on the 128-aligned prefix; the <128-element tail is
    # a tiny plain-JAX computation. Avoids the previous full-tensor pad+slice
    # (2 extra HBM passes) for ragged sizes.
    main = x_flat[:n_main].reshape(n_main // _LANES, _LANES)
    out_main = _swish_2d(main, donate_input).reshape(-1)
    tail = x_flat[n_main:].astype(jnp.float32)
    out_tail = (tail * jax.nn.sigmoid(tail)).astype(x.dtype)
    return jnp.concatenate([out_main, out_tail]).reshape(orig_shape)


if __name__ == "__main__":
    key = jax.random.PRNGKey(0)
    # Small NCHW input consistent with conv-style activation usage.
    x = jax.random.normal(key, (2, 4, 16, 16), dtype=jnp.float32)
    out = jax.block_until_ready(swish(x))
    ref = x * jax.nn.sigmoid(x)
    assert out.shape == x.shape and out.dtype == x.dtype
    assert jnp.allclose(out, ref, atol=1e-5, rtol=1e-5)

    # Ragged size > 128 (exercises aligned-prefix kernel + tiny-tail path).
    x2 = jax.random.normal(jax.random.PRNGKey(0), (3, 5, 77), dtype=jnp.float32)
    out2 = jax.block_until_ready(swish(x2))
    ref2 = x2 * jax.nn.sigmoid(x2)
    assert out2.shape == x2.shape and out2.dtype == x2.dtype
    assert jnp.allclose(out2, ref2, atol=1e-5, rtol=1e-5)

    # Tiny ragged size (< 128 elements total).
    x3 = jax.random.normal(jax.random.PRNGKey(0), (3, 5, 7), dtype=jnp.float32)
    out3 = jax.block_until_ready(swish(x3))
    ref3 = x3 * jax.nn.sigmoid(x3)
    assert out3.shape == x3.shape and out3.dtype == x3.dtype
    assert jnp.allclose(out3, ref3, atol=1e-5, rtol=1e-5)

    # bf16 storage: in-kernel f32 compute, single downcast at the end.
    xb = jax.random.normal(jax.random.PRNGKey(0), (2, 4, 16, 16),
                           dtype=jnp.bfloat16)
    outb = jax.block_until_ready(swish(xb))
    xbf = xb.astype(jnp.float32)
    refb = (xbf * jax.nn.sigmoid(xbf)).astype(jnp.bfloat16)
    assert outb.shape == xb.shape and outb.dtype == xb.dtype
    assert jnp.allclose(outb.astype(jnp.float32), refb.astype(jnp.float32),
                        atol=2e-2, rtol=2e-2)

    print("KERNEL_OK")
</pallas_src>

<mosaic_0001>
module attributes {stable_mosaic.version = 11 : i64} {
  func.func @_swish_kernel(%arg0: i32, %arg1: memref<16x128xf32, #tpu.memory_space<vmem>>, %arg2: memref<16x128xf32, #tpu.memory_space<vmem>>) attributes {dimension_semantics = [#tpu.dimension_semantics<parallel>], iteration_bounds = array<i64: 1>, scalar_prefetch = 0 : i64, scratch_operands = 0 : i64, tpu.core_type = #tpu.core_type<tc>, window_params = [{transform_indices = @transform_0, window_bounds = array<i64: 16, 128>}, {transform_indices = @transform_1, window_bounds = array<i64: 16, 128>}]} {
    %c0 = arith.constant 0 : index
    %c0_0 = arith.constant 0 : index
    %0 = vector.load %arg1[%c0, %c0_0] : memref<16x128xf32, #tpu.memory_space<vmem>>, vector<16x128xf32>
    %cst = arith.constant 0.000000e+00 : f32
    %1 = vector.broadcast %cst : f32 to vector<16x128xf32>
    %2 = arith.subf %1, %0 : vector<16x128xf32>
    %3 = math.exp %2 : vector<16x128xf32>
    %cst_1 = arith.constant 1.000000e+00 : f32
    %4 = vector.broadcast %cst_1 : f32 to vector<16x128xf32>
    %5 = arith.addf %4, %3 : vector<16x128xf32>
    %6 = tpu.reciprocal %5 {approx = true} : vector<16x128xf32> -> vector<16x128xf32>
    %7 = arith.mulf %5, %6 : vector<16x128xf32>
    %cst_2 = arith.constant 2.000000e+00 : f32
    %8 = vector.broadcast %cst_2 : f32 to vector<16x128xf32>
    %9 = arith.subf %8, %7 : vector<16x128xf32>
    %10 = arith.mulf %6, %9 : vector<16x128xf32>
    %11 = arith.mulf %0, %10 : vector<16x128xf32>
    %c0_3 = arith.constant 0 : index
    %c0_4 = arith.constant 0 : index
    %12 = vector.load %arg2[%c0_3, %c0_4] : memref<16x128xf32, #tpu.memory_space<vmem>>, vector<16x128xf32>
    tpu.vector_store %arg2[%c0_3, %c0_4], %11 {strides = array<i32>} : memref<16x128xf32, #tpu.memory_space<vmem>>, vector<16x128xf32>,
    return
  }
  func.func @transform_0(%arg0: i32) -> (i32, i32) {
    %c0_i32 = arith.constant 0 : i32
    %c0_i32_0 = arith.constant 0 : i32
    return %arg0, %c0_i32 : i32, i32
  }
  func.func @transform_1(%arg0: i32) -> (i32, i32) {
    %c0_i32 = arith.constant 0 : i32
    %c0_i32_0 = arith.constant 0 : i32
    return %arg0, %c0_i32 : i32, i32
  }
}

</mosaic_0001>

<llo_original>
// kernel: tpu_custom_call.1
$region0: #{tpu_custom_call.1}
  #allocation0 [shape = 'u32[]', space=smem, size = 0x4, offset = 0x4, fixed_abs, tag = 'smem constant byte address 0x4 - core index']
  #allocation1 [shape = 'u32[144,128]{1,0:T(1,128)}', space=vmem, size = 0x12000, scoped, tag = 'internal scratch']
  %s0 = inlined_call_operand.hbm [shape: f32[16,128], index: 0, kind: input, shape index: {}]
  %s1 = inlined_call_operand.hbm [shape: f32[16,128], index: 1, kind: output, shape index: {}]
  %s2 = sld [smem:[#allocation0]]
  $region18: #{tpu_custom_call.1} parent=0
    _
  %s4 = ssub.s32 1, %s2
  %s5 = scalar_select 0, %s4, %s2
  $region1: #{tpu_custom_call.1} parent=0
    #allocation2 [shape = 'u8[8192]{0}', space=vmem, size = 0x2000, scoped, tag = 'input window, operand 0, single buffered']
    #allocation3 [shape = 's32[1]{0}', space=sflag, size = 0x4, scoped, tag = 'scoped memory for tpu_custom_call.1']
    #allocation4 [shape = 's32[1]{0}', space=sflag, size = 0x4, scoped, tag = 'scoped memory for tpu_custom_call.1']
    #allocation5 [shape = 'u8[8192]{0}', space=vmem, size = 0x2000, scoped, tag = 'output window, operand 0, single buffered']
    %6 = vsyncpa [#allocation3], 0
    %7 = vsyncpa [#allocation4], 0
    // Predicated region
    $region2: #{tpu_custom_call.1} parent=1 // pred_check
      _
    $region3: #{tpu_custom_call.1} parent=1 // pred_check_branch
      %9 = sbr.rel (0) target = $region5
    $region4: #{tpu_custom_call.1} parent=1 // pred_region
      %s11 = ssub.s32 256, 256
      %12 = vsyncadd [#allocation3], %s11
      %s13 = sshll.u32 [#allocation2], 4
      %s14 = int_to_ptr.vmem [resolvable:$true] %s13
      %19 = dma.hbm_to_vmem [thread:$0]  %s0, 256, %s14, [#allocation3], 128, 128, 8
    $region5: #{tpu_custom_call.1} parent=1 // pred_fallthru
      _
    // Predicated region
    $region6: #{tpu_custom_call.1} parent=1 // pred_check
      _
    $region7: #{tpu_custom_call.1} parent=1 // pred_check_branch
      %21 = sbr.rel (0) target = $region9
    $region8: #{tpu_custom_call.1} parent=1 // pred_region
      %22 = dma.done [#allocation3], 256
    $region9: #{tpu_custom_call.1} parent=1 // pred_fallthru
      _
    %v23 = vld [vmem:[#allocation2] sm:$0xff]
    %v24 = vld [vmem:[#allocation2 + $0x8] sm:$0xff]
    %v25 = vsub.f32 0.0, %v23
    %v26 = vsub.f32 0.0, %v24
    %v27 = vmul.f32 %v25, 1.442695
    %v28 = vpow.pop %v27
    %v29 = vmul.f32 %v26, 1.442695
    %v30 = vpow.pop %v29
    %v31 = vadd.f32 %v28, 1.0
    %v32 = vadd.f32 %v30, 1.0
    %v33 = vrcp.pop %v31
    %v34 = vrcp.pop %v32
    %v35 = vmul.f32 %v31, %v33
    %v36 = vmul.f32 %v32, %v34
    %v37 = vsub.f32 2.0, %v35
    %v38 = vsub.f32 2.0, %v36
    %v39 = vmul.f32 %v33, %v37
    %v40 = vmul.f32 %v34, %v38
    %v41 = vmul.f32 %v23, %v39
    %v42 = vmul.f32 %v24, %v40
    %43 = vst [vmem:[#allocation5] sm:$0xff] %v41
    %44 = vst [vmem:[#allocation5 + $0x8] sm:$0xff] %v42
    // Predicated region
    $region10: #{tpu_custom_call.1} parent=1 // pred_check
      _
    $region11: #{tpu_custom_call.1} parent=1 // pred_check_branch
      %46 = sbr.rel (0) target = $region13
    $region12: #{tpu_custom_call.1} parent=1 // pred_region
      %s48 = ssub.s32 256, 256
      %49 = vsyncadd [#allocation4], %s48
      %s50 = sshll.u32 [#allocation5], 4
      %s51 = int_to_ptr.vmem [resolvable:$true] %s50
      %56 = dma.vmem_to_hbm [thread:$0]  %s51, 256, %s1, [#allocation4], 128, 128, 8
    $region13: #{tpu_custom_call.1} parent=1 // pred_fallthru
      _
    // Predicated region
    $region14: #{tpu_custom_call.1} parent=1 // pred_check
      _
    $region15: #{tpu_custom_call.1} parent=1 // pred_check_branch
      %58 = sbr.rel (0) target = $region17
    $region16: #{tpu_custom_call.1} parent=1 // pred_region
      %59 = dma.done [#allocation4], 256
    $region17: #{tpu_custom_call.1} parent=1 // pred_fallthru
      _
    %60 = vsyncpa [#allocation3], 1
    %61 = vsyncpa [#allocation4], 1

</llo_original>
